<compile_context>
chip_gen: v7x
topology: tpu7x:2x2x1
jax: 0.10.0
libtpu: 0.0.40
codegen_flags: <defaults>
</compile_context>

<pallas_src>
import functools

import jax
import jax.numpy as jnp
from jax.experimental import pallas as pl
from jax.experimental.pallas import tpu as pltpu

HIDDEN = 128          # shared trunk width
STREAM_HIDDEN = 64    # per-stream hidden width (value: lanes [0,64), adv: lanes [64,128))


def dueling_dqn_kernel(x_ref, w1_ref, wh_ref, w2_ref, consts_ref, b2_ref, out_ref,
                       *, output_dim):
    f32 = jnp.float32
    mm_dtype = w1_ref.dtype            # bf16 (default MXU fast path) or f32

    consts = consts_ref[...]           # (2, 128) f32, resident in VMEM
    b1 = consts[0:1, :]                # shared-trunk bias
    bh = consts[1:2, :]                # [bv1 | ba1]

    # shared trunk: Linear(input_dim, 128) + ReLU
    h1 = jnp.dot(x_ref[...], w1_ref[...], preferred_element_type=f32) + b1
    h1 = jnp.maximum(h1, 0.0)

    # both streams' first Linear(128, 64) fused into one lane-full (128,128) matmul + ReLU
    h2 = jnp.dot(h1.astype(mm_dtype), wh_ref[...], preferred_element_type=f32) + bh
    h2 = jnp.maximum(h2, 0.0)          # lanes [0,64) value hidden, [64,128) adv hidden

    # second layer: one lane-padded (128, out_pad) matmul producing, per row,
    #   lanes [0, output_dim)      : advantage (value-hidden rows are zero)
    #   lane  output_dim           : value     (adv-hidden rows are zero, bv2 in bias)
    #   lane  output_dim + 1       : advantage mean (rowsum(wa2)/D, mean(ba2) in bias)
    head = jnp.dot(h2.astype(mm_dtype), w2_ref[...],
                   preferred_element_type=f32) + b2_ref[...]

    adv = head[:, :output_dim]
    value = head[:, output_dim:output_dim + 1]
    adv_mean = head[:, output_dim + 1:output_dim + 2]

    # dueling combine; only the real output_dim lanes are ever stored.
    out_ref[...] = (adv + (value - adv_mean)).astype(out_ref.dtype)


def fuse_params(p, compute_dtype=jnp.bfloat16):
    """One-time repacking of the PyTorch-style parameters for the kernel."""
    f32 = jnp.float32
    output_dim = p["wa2"].shape[1]
    head_cols = output_dim + 2                     # adv lanes + value lane + mean lane
    out_pad = 128 * (-(-head_cols // 128))         # lane-dense matmul width
    vcol, mcol = output_dim, output_dim + 1

    w1 = p["w1"].astype(compute_dtype)                                        # (in, 128)
    w_heads = jnp.concatenate([p["wv1"], p["wa1"]], 1).astype(compute_dtype)  # (128, 128)

    w2 = jnp.zeros((HIDDEN, out_pad), f32)
    w2 = w2.at[STREAM_HIDDEN:, :output_dim].set(p["wa2"])                     # advantage
    w2 = w2.at[:STREAM_HIDDEN, vcol].set(p["wv2"][:, 0])                      # value head
    w2 = w2.at[STREAM_HIDDEN:, mcol].set(jnp.sum(p["wa2"], axis=1) / output_dim)  # adv mean
    w2 = w2.astype(compute_dtype)

    b2 = jnp.zeros((1, out_pad), f32)
    b2 = b2.at[0, :output_dim].set(p["ba2"][0])
    b2 = b2.at[0, vcol].set(p["bv2"][0, 0])
    b2 = b2.at[0, mcol].set(jnp.mean(p["ba2"][0]))

    consts = jnp.concatenate(
        [p["b1"].astype(f32),
         jnp.concatenate([p["bv1"], p["ba1"]], 1).astype(f32)],
        axis=0)                                                               # (2, 128) f32

    return dict(w1=w1, w_heads=w_heads, w2=w2, consts=consts, b2=b2,
                output_dim=output_dim, out_pad=out_pad)


def dueling_dqn_forward(x, fused, *, block_b=4096):
    output_dim = fused["output_dim"]
    out_pad = fused["out_pad"]
    B, input_dim = x.shape

    # Batch tile: multiple of 8 sublanes.  Default 4096 amortizes the ~0.35 us
    # per-grid-step overhead while double-buffered (tb, *) tiles stay a few MiB
    # (well under the v7x 32 MiB scoped-VMEM default).  Cap at ceil(B/2) when B
    # allows so the "parallel" grid has >= 2 steps and both v7x TCs get work.
    tb = min(block_b, B)
    if B > 8:
        tb = min(tb, -(-B // 2))
    tb = max(8, ((tb + 7) // 8) * 8)
    nb = -(-B // tb)
    b_pad = nb * tb

    x = x.astype(fused["w1"].dtype)     # bf16 default halves the streamed x bytes
    if b_pad != B:
        x = jnp.pad(x, ((0, b_pad - B), (0, 0)))

    operands = (x, fused["w1"], fused["w_heads"], fused["w2"],
                fused["consts"], fused["b2"])

    def const_spec(a):                  # full-shape, constant index_map -> resident
        return pl.BlockSpec(a.shape, lambda i: (0, 0))

    grid_spec = pltpu.PrefetchScalarGridSpec(
        num_scalar_prefetch=0,
        grid=(nb,),
        in_specs=[
            pl.BlockSpec((tb, input_dim), lambda i: (i, 0)),    # streamed activations
            const_spec(fused["w1"]),
            const_spec(fused["w_heads"]),
            const_spec(fused["w2"]),
            const_spec(fused["consts"]),
            const_spec(fused["b2"]),
        ],
        # last block dim == full array dim (output_dim): tiny, un-inflated writeback,
        # and no wrapper-side column slice re-reading a padded slab.
        out_specs=pl.BlockSpec((tb, output_dim), lambda i: (i, 0)),
    )

    weight_bytes = sum(int(a.size) * a.dtype.itemsize for a in operands[1:])
    cost = pl.CostEstimate(
        flops=2 * b_pad * (input_dim * HIDDEN + HIDDEN * HIDDEN + HIDDEN * out_pad)
        + 3 * b_pad * output_dim,
        transcendentals=0,
        bytes_accessed=int(x.size) * x.dtype.itemsize
        + b_pad * output_dim * 4 + weight_bytes,
    )

    out = pl.pallas_call(
        functools.partial(dueling_dqn_kernel, output_dim=output_dim),
        grid_spec=grid_spec,
        out_shape=jax.ShapeDtypeStruct((b_pad, output_dim), jnp.float32),
        compiler_params=pltpu.CompilerParams(
            dimension_semantics=("parallel",),      # shard batch tiles across TCs on v7x
            vmem_limit_bytes=32 * 1024 * 1024,      # safe on v5e/v6e/v7x; tiles are small
        ),
        cost_estimate=cost,
    )(*operands)

    return out[:B]      # padded rows (if any) hold bias-only garbage; drop them here


def init_params(key, input_dim, output_dim):
    """PyTorch-style uniform(-1/sqrt(fan_in), 1/sqrt(fan_in)) init.

    Weights stored transposed vs torch: (in_features, out_features); biases (1, out).
    """
    def linear(key, fan_in, fan_out):
        kw, kb = jax.random.split(key)
        bound = 1.0 / jnp.sqrt(jnp.float32(fan_in))
        w = jax.random.uniform(kw, (fan_in, fan_out), jnp.float32, -bound, bound)
        b = jax.random.uniform(kb, (1, fan_out), jnp.float32, -bound, bound)
        return w, b

    k1, k2, k3, k4, k5 = jax.random.split(key, 5)
    w1, b1 = linear(k1, input_dim, 128)
    wv1, bv1 = linear(k2, 128, 64)
    wv2, bv2 = linear(k3, 64, 1)
    wa1, ba1 = linear(k4, 128, 64)
    wa2, ba2 = linear(k5, 64, output_dim)
    return dict(w1=w1, b1=b1, wv1=wv1, bv1=bv1, wv2=wv2, bv2=bv2,
                wa1=wa1, ba1=ba1, wa2=wa2, ba2=ba2)


def reference_forward(x, p, matmul_dtype=jnp.float32):
    """Pure-JAX reference of the original module math.

    `matmul_dtype` mirrors the kernel's matmul-operand dtype (f32 or bf16),
    with f32 accumulation and f32 elementwise.
    """
    f32 = jnp.float32
    dt = matmul_dtype

    def mm(a, w):
        return jnp.dot(a.astype(dt), w.astype(dt), preferred_element_type=f32)

    h = jnp.maximum(mm(x, p["w1"]) + p["b1"], 0.0)
    v = jnp.maximum(mm(h, p["wv1"]) + p["bv1"], 0.0)
    value = mm(v, p["wv2"]) + p["bv2"]
    a = jnp.maximum(mm(h, p["wa1"]) + p["ba1"], 0.0)
    adv = mm(a, p["wa2"]) + p["ba2"]
    return value + (adv - adv.mean(axis=1, keepdims=True))


if __name__ == "__main__":
    key = jax.random.PRNGKey(0)
    k_params, k_x, k_x2 = jax.random.split(key, 3)

    batch, input_dim, output_dim = 8, 32, 8
    params = init_params(k_params, input_dim, output_dim)
    x = jax.random.normal(k_x, (batch, input_dim), jnp.float32)

    # --- default bf16-operand path (MXU fast path), f32 accumulate/elementwise ---
    fused_bf16 = fuse_params(params)                       # compute_dtype=bf16 default
    out_bf = jax.block_until_ready(dueling_dqn_forward(x, fused_bf16))
    ref_bf = reference_forward(x, params, matmul_dtype=jnp.bfloat16)
    assert out_bf.shape == (batch, output_dim)
    assert jnp.allclose(out_bf, ref_bf, atol=2e-2, rtol=2e-2), "bf16 mismatch vs reference"

    # --- f32 path: tight parity check vs reference ---
    fused_f32 = fuse_params(params, compute_dtype=jnp.float32)
    out = jax.block_until_ready(dueling_dqn_forward(x, fused_f32))
    ref = reference_forward(x, params)
    assert jnp.allclose(out, ref, atol=1e-4, rtol=1e-4), "f32 mismatch vs reference"

    # --- multi-step grid + batch padding path (grid=3, B=40 padded to 48) ---
    x2 = jax.random.normal(k_x2, (40, input_dim), jnp.float32)
    out2 = jax.block_until_ready(dueling_dqn_forward(x2, fused_f32, block_b=16))
    ref2 = reference_forward(x2, params)
    assert out2.shape == (40, output_dim)
    assert jnp.allclose(out2, ref2, atol=1e-4, rtol=1e-4), "gridded f32 mismatch"

    print("KERNEL_OK")
</pallas_src>

<mosaic_0001>
module attributes {stable_mosaic.version = 11 : i64} {
  func.func @dueling_dqn_kernel(%arg0: i32, %arg1: memref<8x32xbf16, #tpu.memory_space<vmem>>, %arg2: memref<32x128xbf16, #tpu.memory_space<vmem>>, %arg3: memref<128x128xbf16, #tpu.memory_space<vmem>>, %arg4: memref<128x128xbf16, #tpu.memory_space<vmem>>, %arg5: memref<2x128xf32, #tpu.memory_space<vmem>>, %arg6: memref<1x128xf32, #tpu.memory_space<vmem>>, %arg7: memref<8x8xf32, #tpu.memory_space<vmem>>) attributes {dimension_semantics = [#tpu.dimension_semantics<parallel>], iteration_bounds = array<i64: 1>, scalar_prefetch = 0 : i64, scratch_operands = 0 : i64, tpu.core_type = #tpu.core_type<tc>, window_params = [{transform_indices = @transform_0, window_bounds = array<i64: 8, 32>}, {pipeline_mode = #tpu.pipeline_mode<synchronous>, transform_indices = @transform_1, window_bounds = array<i64: 32, 128>}, {pipeline_mode = #tpu.pipeline_mode<synchronous>, transform_indices = @transform_2, window_bounds = array<i64: 128, 128>}, {pipeline_mode = #tpu.pipeline_mode<synchronous>, transform_indices = @transform_3, window_bounds = array<i64: 128, 128>}, {pipeline_mode = #tpu.pipeline_mode<synchronous>, transform_indices = @transform_4, window_bounds = array<i64: 2, 128>}, {pipeline_mode = #tpu.pipeline_mode<synchronous>, transform_indices = @transform_5, window_bounds = array<i64: 1, 128>}, {transform_indices = @transform_6, window_bounds = array<i64: 8, 8>}]} {
    %c0 = arith.constant 0 : index
    %c0_0 = arith.constant 0 : index
    %0 = vector.load %arg5[%c0, %c0_0] : memref<2x128xf32, #tpu.memory_space<vmem>>, vector<2x128xf32>
    %1 = vector.extract_strided_slice %0 {offsets = [0, 0], sizes = [1, 128], strides = [1, 1]} : vector<2x128xf32> to vector<1x128xf32>
    %2 = vector.extract_strided_slice %0 {offsets = [1, 0], sizes = [1, 128], strides = [1, 1]} : vector<2x128xf32> to vector<1x128xf32>
    %c0_1 = arith.constant 0 : index
    %c0_2 = arith.constant 0 : index
    %3 = vector.load %arg1[%c0_1, %c0_2] : memref<8x32xbf16, #tpu.memory_space<vmem>>, vector<8x32xbf16>
    %c0_3 = arith.constant 0 : index
    %c0_4 = arith.constant 0 : index
    %4 = vector.load %arg2[%c0_3, %c0_4] : memref<32x128xbf16, #tpu.memory_space<vmem>>, vector<32x128xbf16>
    %cst = arith.constant dense<0.000000e+00> : vector<8x128xf32>
    %5 = tpu.matmul %3, %4, %cst {dimension_numbers = #tpu.dot_dimension_numbers<[1], [0], [0], [1], [0, 0, 1, 1], [], []>} : vector<8x32xbf16>, vector<32x128xbf16>, vector<8x128xf32> -> vector<8x128xf32>
    %6 = vector.broadcast %1 : vector<1x128xf32> to vector<8x128xf32>
    %7 = arith.addf %5, %6 : vector<8x128xf32>
    %cst_5 = arith.constant 0.000000e+00 : f32
    %8 = vector.broadcast %cst_5 : f32 to vector<8x128xf32>
    %9 = arith.maximumf %7, %8 : vector<8x128xf32>
    %10 = arith.truncf %9 : vector<8x128xf32> to vector<8x128xbf16>
    %c0_6 = arith.constant 0 : index
    %c0_7 = arith.constant 0 : index
    %11 = vector.load %arg3[%c0_6, %c0_7] : memref<128x128xbf16, #tpu.memory_space<vmem>>, vector<128x128xbf16>
    %cst_8 = arith.constant dense<0.000000e+00> : vector<8x128xf32>
    %12 = tpu.matmul %10, %11, %cst_8 {dimension_numbers = #tpu.dot_dimension_numbers<[1], [0], [0], [1], [0, 0, 1, 1], [], []>} : vector<8x128xbf16>, vector<128x128xbf16>, vector<8x128xf32> -> vector<8x128xf32>
    %13 = vector.broadcast %2 : vector<1x128xf32> to vector<8x128xf32>
    %14 = arith.addf %12, %13 : vector<8x128xf32>
    %cst_9 = arith.constant 0.000000e+00 : f32
    %15 = vector.broadcast %cst_9 : f32 to vector<8x128xf32>
    %16 = arith.maximumf %14, %15 : vector<8x128xf32>
    %17 = arith.truncf %16 : vector<8x128xf32> to vector<8x128xbf16>
    %c0_10 = arith.constant 0 : index
    %c0_11 = arith.constant 0 : index
    %18 = vector.load %arg4[%c0_10, %c0_11] : memref<128x128xbf16, #tpu.memory_space<vmem>>, vector<128x128xbf16>
    %cst_12 = arith.constant dense<0.000000e+00> : vector<8x128xf32>
    %19 = tpu.matmul %17, %18, %cst_12 {dimension_numbers = #tpu.dot_dimension_numbers<[1], [0], [0], [1], [0, 0, 1, 1], [], []>} : vector<8x128xbf16>, vector<128x128xbf16>, vector<8x128xf32> -> vector<8x128xf32>
    %c0_13 = arith.constant 0 : index
    %c0_14 = arith.constant 0 : index
    %20 = vector.load %arg6[%c0_13, %c0_14] : memref<1x128xf32, #tpu.memory_space<vmem>>, vector<1x128xf32>
    %21 = vector.broadcast %20 : vector<1x128xf32> to vector<8x128xf32>
    %22 = arith.addf %19, %21 : vector<8x128xf32>
    %23 = vector.extract_strided_slice %22 {offsets = [0, 0], sizes = [8, 8], strides = [1, 1]} : vector<8x128xf32> to vector<8x8xf32>
    %24 = vector.extract_strided_slice %22 {offsets = [0, 8], sizes = [8, 1], strides = [1, 1]} : vector<8x128xf32> to vector<8x1xf32>
    %25 = vector.extract_strided_slice %22 {offsets = [0, 9], sizes = [8, 1], strides = [1, 1]} : vector<8x128xf32> to vector<8x1xf32>
    %26 = arith.subf %24, %25 : vector<8x1xf32>
    %27 = vector.broadcast %26 : vector<8x1xf32> to vector<8x8xf32>
    %28 = arith.addf %23, %27 : vector<8x8xf32>
    %c0_15 = arith.constant 0 : index
    %c0_16 = arith.constant 0 : index
    %29 = vector.load %arg7[%c0_15, %c0_16] : memref<8x8xf32, #tpu.memory_space<vmem>>, vector<8x8xf32>
    tpu.vector_store %arg7[%c0_15, %c0_16], %28 {strides = array<i32>} : memref<8x8xf32, #tpu.memory_space<vmem>>, vector<8x8xf32>,
    return
  }
  func.func @transform_0(%arg0: i32) -> (i32, i32) {
    %c0_i32 = arith.constant 0 : i32
    %c0_i32_0 = arith.constant 0 : i32
    return %arg0, %c0_i32 : i32, i32
  }
  func.func @transform_1(%arg0: i32) -> (i32, i32) {
    %c0_i32 = arith.constant 0 : i32
    %c0_i32_0 = arith.constant 0 : i32
    %c0_i32_1 = arith.constant 0 : i32
    return %c0_i32, %c0_i32_0 : i32, i32
  }
  func.func @transform_2(%arg0: i32) -> (i32, i32) {
    %c0_i32 = arith.constant 0 : i32
    %c0_i32_0 = arith.constant 0 : i32
    %c0_i32_1 = arith.constant 0 : i32
    return %c0_i32, %c0_i32_0 : i32, i32
  }
  func.func @transform_3(%arg0: i32) -> (i32, i32) {
    %c0_i32 = arith.constant 0 : i32
    %c0_i32_0 = arith.constant 0 : i32
    %c0_i32_1 = arith.constant 0 : i32
    return %c0_i32, %c0_i32_0 : i32, i32
  }
  func.func @transform_4(%arg0: i32) -> (i32, i32) {
    %c0_i32 = arith.constant 0 : i32
    %c0_i32_0 = arith.constant 0 : i32
    %c0_i32_1 = arith.constant 0 : i32
    return %c0_i32, %c0_i32_0 : i32, i32
  }
  func.func @transform_5(%arg0: i32) -> (i32, i32) {
    %c0_i32 = arith.constant 0 : i32
    %c0_i32_0 = arith.constant 0 : i32
    %c0_i32_1 = arith.constant 0 : i32
    return %c0_i32, %c0_i32_0 : i32, i32
  }
  func.func @transform_6(%arg0: i32) -> (i32, i32) {
    %c0_i32 = arith.constant 0 : i32
    %c0_i32_0 = arith.constant 0 : i32
    return %arg0, %c0_i32 : i32, i32
  }
}

</mosaic_0001>

<llo_original>
// kernel: tpu_custom_call.1
$region0: #{tpu_custom_call.1}
  #allocation0 [shape = 'u32[]', space=smem, size = 0x4, offset = 0x4, fixed_abs, tag = 'smem constant byte address 0x4 - core index']
  #allocation1 [shape = 'u32[144,128]{1,0:T(1,128)}', space=vmem, size = 0x12000, scoped, tag = 'internal scratch']
  %s0 = inlined_call_operand.hbm [shape: bf16[8,32], index: 0, kind: input, shape index: {}]
  %s1 = inlined_call_operand.hbm [shape: bf16[32,128], index: 1, kind: input, shape index: {}]
  %s2 = inlined_call_operand.hbm [shape: bf16[128,128], index: 2, kind: input, shape index: {}]
  %s3 = inlined_call_operand.hbm [shape: bf16[128,128], index: 3, kind: input, shape index: {}]
  %s4 = inlined_call_operand.vmem [shape: f32[2,128], index: 4, kind: input, shape index: {}]
  %s5 = inlined_call_operand.vmem [shape: f32[1,128], index: 5, kind: input, shape index: {}]
  %s6 = inlined_call_operand.hbm [shape: f32[8,8], index: 6, kind: output, shape index: {}]
  %s7 = sld [smem:[#allocation0]]
  $region50: #{tpu_custom_call.1} parent=0
    _
  %s9 = ssub.s32 1, %s7
  %s10 = scalar_select 0, %s9, %s7
  $region1: #{tpu_custom_call.1} parent=0
    #allocation2 [shape = 'u8[2048]{0}', space=vmem, size = 0x800, scoped, tag = 'input window, operand 0, single buffered']
    #allocation3 [shape = 's32[1]{0}', space=sflag, size = 0x4, scoped, tag = 'scoped memory for tpu_custom_call.1']
    #allocation4 [shape = 's32[1]{0}', space=sflag, size = 0x4, scoped, tag = 'scoped memory for tpu_custom_call.1']
    #allocation5 [shape = 'u8[8192]{0}', space=vmem, size = 0x2000, scoped, tag = 'input window, operand 1, single buffered']
    #allocation6 [shape = 's32[1]{0}', space=sflag, size = 0x4, scoped, tag = 'scoped memory for tpu_custom_call.1']
    #allocation7 [shape = 'u8[32768]{0}', space=vmem, size = 0x8000, scoped, tag = 'input window, operand 2, single buffered']
    #allocation8 [shape = 'u8[32768]{0}', space=vmem, size = 0x8000, scoped, tag = 'input window, operand 3, single buffered']
    #allocation9 [shape = 's32[1]{0}', space=sflag, size = 0x4, scoped, tag = 'scoped memory for tpu_custom_call.1']
    #allocation10 [shape = 'u8[4096]{0}', space=vmem, size = 0x1000, scoped, tag = 'output window, operand 0, single buffered']
    %11 = vsyncpa [#allocation3], 0
    %12 = vsyncpa [#allocation6], 0
    %13 = vsyncpa [#allocation9], 0
    %14 = vsyncpa [#allocation4], 0
    // Predicated region
    $region2: #{tpu_custom_call.1} parent=1 // pred_check
      _
    $region3: #{tpu_custom_call.1} parent=1 // pred_check_branch
      %16 = sbr.rel (0) target = $region5
    $region4: #{tpu_custom_call.1} parent=1 // pred_region
      %s18 = ssub.s32 64, 64
      %19 = vsyncadd [#allocation3], %s18
      %s21 = sshll.u32 [#allocation2], 4
      %s22 = int_to_ptr.vmem [resolvable:$true] %s21
      %24 = dma.hbm_to_vmem [thread:$0]  %s0, 64, %s22, [#allocation3]
    $region5: #{tpu_custom_call.1} parent=1 // pred_fallthru
      _
    // Predicated region
    $region6: #{tpu_custom_call.1} parent=1 // pred_check
      _
    $region7: #{tpu_custom_call.1} parent=1 // pred_check_branch
      %26 = sbr.rel (0) target = $region9
    $region8: #{tpu_custom_call.1} parent=1 // pred_region
      %s28 = ssub.s32 256, 256
      %29 = vsyncadd [#allocation6], %s28
      %s30 = sshll.u32 [#allocation5], 4
      %s31 = int_to_ptr.vmem [resolvable:$true] %s30
      %36 = dma.hbm_to_vmem [thread:$0]  %s1, 256, %s31, [#allocation6], 64, 64, 4
    $region9: #{tpu_custom_call.1} parent=1 // pred_fallthru
      _
    // Predicated region
    $region10: #{tpu_custom_call.1} parent=1 // pred_check
      _
    $region11: #{tpu_custom_call.1} parent=1 // pred_check_branch
      %38 = sbr.rel (0) target = $region13
    $region12: #{tpu_custom_call.1} parent=1 // pred_region
      %s40 = ssub.s32 1024, 1024
      %41 = vsyncadd [#allocation6], %s40
      %s42 = sshll.u32 [#allocation7], 4
      %s43 = int_to_ptr.vmem [resolvable:$true] %s42
      %48 = dma.hbm_to_vmem [thread:$0]  %s2, 1024, %s43, [#allocation6], 64, 64, 4
    $region13: #{tpu_custom_call.1} parent=1 // pred_fallthru
      _
    // Predicated region
    $region14: #{tpu_custom_call.1} parent=1 // pred_check
      _
    $region15: #{tpu_custom_call.1} parent=1 // pred_check_branch
      %50 = sbr.rel (0) target = $region17
    $region16: #{tpu_custom_call.1} parent=1 // pred_region
      %s52 = ssub.s32 1024, 1024
      %53 = vsyncadd [#allocation9], %s52
      %s54 = sshll.u32 [#allocation8], 4
      %s55 = int_to_ptr.vmem [resolvable:$true] %s54
      %60 = dma.hbm_to_vmem [thread:$0]  %s3, 1024, %s55, [#allocation9], 64, 64, 4
    $region17: #{tpu_custom_call.1} parent=1 // pred_fallthru
      _
    // Predicated region
    $region18: #{tpu_custom_call.1} parent=1 // pred_check
      _
    $region19: #{tpu_custom_call.1} parent=1 // pred_check_branch
      %62 = sbr.rel (0) target = $region21
    $region20: #{tpu_custom_call.1} parent=1 // pred_region
      _
    $region21: #{tpu_custom_call.1} parent=1 // pred_fallthru
      _
    // Predicated region
    $region22: #{tpu_custom_call.1} parent=1 // pred_check
      _
    $region23: #{tpu_custom_call.1} parent=1 // pred_check_branch
      %64 = sbr.rel (0) target = $region25
    $region24: #{tpu_custom_call.1} parent=1 // pred_region
      _
    $region25: #{tpu_custom_call.1} parent=1 // pred_fallthru
      _
    // Predicated region
    $region26: #{tpu_custom_call.1} parent=1 // pred_check
      _
    $region27: #{tpu_custom_call.1} parent=1 // pred_check_branch
      %66 = sbr.rel (0) target = $region29
    $region28: #{tpu_custom_call.1} parent=1 // pred_region
      %67 = dma.done [#allocation3], 64
    $region29: #{tpu_custom_call.1} parent=1 // pred_fallthru
      _
    // Predicated region
    $region30: #{tpu_custom_call.1} parent=1 // pred_check
      _
    $region31: #{tpu_custom_call.1} parent=1 // pred_check_branch
      %69 = sbr.rel (0) target = $region33
    $region32: #{tpu_custom_call.1} parent=1 // pred_region
      %70 = dma.done [#allocation6], 256
    $region33: #{tpu_custom_call.1} parent=1 // pred_fallthru
      _
    // Predicated region
    $region34: #{tpu_custom_call.1} parent=1 // pred_check
      _
    $region35: #{tpu_custom_call.1} parent=1 // pred_check_branch
      %72 = sbr.rel (0) target = $region37
    $region36: #{tpu_custom_call.1} parent=1 // pred_region
      %73 = dma.done [#allocation6], 1024
    $region37: #{tpu_custom_call.1} parent=1 // pred_fallthru
      _
    // Predicated region
    $region38: #{tpu_custom_call.1} parent=1 // pred_check
      _
    $region39: #{tpu_custom_call.1} parent=1 // pred_check_branch
      %75 = sbr.rel (0) target = $region41
    $region40: #{tpu_custom_call.1} parent=1 // pred_region
      %76 = dma.done [#allocation9], 1024
    $region41: #{tpu_custom_call.1} parent=1 // pred_fallthru
      _
    %v78 = vld [vmem:[%s4] sm:$0x3]
    %v79 = vld [vmem:[#allocation2] sm:$0xf]
    %v80 = vld [vmem:[#allocation5] sm:$0xf]
    %v81 = vld [vmem:[#allocation5 + $0x4] sm:$0xf]
    %v82 = vld [vmem:[#allocation5 + $0x8] sm:$0xf]
    %v83 = vld [vmem:[#allocation5 + $0xc] sm:$0xf]
    %v84 = vlaneseq
    %v85 = vshrl.u32 %v84, 7
    %v86 = vsub.s32 0, %v85
    %v87 = vrot.slane %v78, %v86
    %v92 = vunpack.c.l.b16 %v80
    %v93 = vunpack.c.l.b16 %v81
    %v94 = vunpack.c.l.b16 %v82
    %v95 = vunpack.c.l.b16 %v83
    %v96 = vpack.c.b16 %v93, %v92
    %v97 = vpack.c.b16 %v95, %v94
    %vm100 = vcmask 261120
    %v102 = vsel %vm100, %v79, 0
    %104 = vmatprep.subr.bf16.mxu0 0
    %105 = vmatpush1.bf16.msra.mxu0 %v96
    %106 = vmatprep.subr.bf16.mxu0 0
    %107 = vmatpush1.bf16.msra.mxu0 %v97
    %108 = vmatprep.subr.bf16.mxu0 0
    %109 = vmatpush1.bf16.msra.mxu0 0
    %110 = vmatprep.subr.bf16.mxu0 0
    %111 = vmatpush1.bf16.msra.mxu0 0
    %112 = vmatprep.subr.bf16.mxu0 0
    %113 = vmatpush1.bf16.msra.mxu0 0
    %114 = vmatprep.subr.bf16.mxu0 0
    %115 = vmatpush1.bf16.msra.mxu0 0
    %116 = vmatprep.subr.bf16.mxu0 0
    %117 = vmatpush1.bf16.msra.mxu0 0
    %118 = vmatprep.subr.bf16.mxu0 0
    %119 = vmatpush1.bf16.msra.mxu0 0
    %120 = vmatprep.subr.bf16.mxu0 0
    %121 = vmatpush1.bf16.msra.mxu0 0
    %122 = vmatprep.subr.bf16.mxu0 0
    %123 = vmatpush1.bf16.msra.mxu0 0
    %124 = vmatprep.subr.bf16.mxu0 0
    %125 = vmatpush1.bf16.msra.mxu0 0
    %126 = vmatprep.subr.bf16.mxu0 0
    %127 = vmatpush1.bf16.msra.mxu0 0
    %128 = vmatprep.subr.bf16.mxu0 0
    %129 = vmatpush1.bf16.msra.mxu0 0
    %130 = vmatprep.subr.bf16.mxu0 0
    %131 = vmatpush1.bf16.msra.mxu0 0
    %132 = vmatprep.subr.bf16.mxu0 0
    %133 = vmatpush1.bf16.msra.mxu0 0
    %134 = vmatprep.subr.bf16.mxu0 0
    %135 = vmatpush1.bf16.msra.mxu0 0
    %136 = vmatprep.mubr.bf16.mxu0 0
    %137 = vmatmul.mubr.bf16.gmra.mrb[0].mxu0 %v102
    %v138 = vpop.f32.mrb[0].mxu0
    %v139 = vadd.f32 %v87, %v138
    %v140 = vpop.f32.mrb[0].mxu0
    %v141 = vpop.f32.mrb[0].mxu0
    %v142 = vpop.f32.mrb[0].mxu0
    %143 = vdwg.mxu0
    %v144 = vmax.f32 %v139, 0.0
    %v145 = vpack.c.bf16 %v144, %v144
    %v146 = vld [vmem:[#allocation7] sm:$0xf]
    %v147 = vld [vmem:[#allocation7 + $0x4] sm:$0xf]
    %v148 = vld [vmem:[#allocation7 + $0x8] sm:$0xf]
    %v149 = vld [vmem:[#allocation7 + $0xc] sm:$0xf]
    %v150 = vld [vmem:[#allocation7 + $0x10] sm:$0xf]
    %v151 = vld [vmem:[#allocation7 + $0x14] sm:$0xf]
    %v152 = vld [vmem:[#allocation7 + $0x18] sm:$0xf]
    %v153 = vld [vmem:[#allocation7 + $0x1c] sm:$0xf]
    %v154 = vld [vmem:[#allocation7 + $0x20] sm:$0xf]
    %v155 = vld [vmem:[#allocation7 + $0x24] sm:$0xf]
    %v156 = vld [vmem:[#allocation7 + $0x28] sm:$0xf]
    %v157 = vld [vmem:[#allocation7 + $0x2c] sm:$0xf]
    %v158 = vld [vmem:[#allocation7 + $0x30] sm:$0xf]
    %v159 = vld [vmem:[#allocation7 + $0x34] sm:$0xf]
    %v160 = vld [vmem:[#allocation7 + $0x38] sm:$0xf]
    %v161 = vld [vmem:[#allocation7 + $0x3c] sm:$0xf]
    %v162 = vlaneseq
    %v163 = vshrl.u32 %v162, 7
    %v164 = vsub.s32 1, %v163
    %v165 = vrot.slane %v78, %v164
    %v182 = vunpack.c.l.b16 %v146
    %v183 = vunpack.c.l.b16 %v147
    %v184 = vunpack.c.l.b16 %v148
    %v185 = vunpack.c.l.b16 %v149
    %v186 = vunpack.c.l.b16 %v150
    %v187 = vunpack.c.l.b16 %v151
    %v188 = vunpack.c.l.b16 %v152
    %v189 = vunpack.c.l.b16 %v153
    %v190 = vunpack.c.l.b16 %v154
    %v191 = vunpack.c.l.b16 %v155
    %v192 = vunpack.c.l.b16 %v156
    %v193 = vunpack.c.l.b16 %v157
    %v194 = vunpack.c.l.b16 %v158
    %v195 = vunpack.c.l.b16 %v159
    %v196 = vunpack.c.l.b16 %v160
    %v197 = vunpack.c.l.b16 %v161
    %v198 = vpack.c.b16 %v183, %v182
    %v199 = vpack.c.b16 %v185, %v184
    %v200 = vpack.c.b16 %v187, %v186
    %v201 = vpack.c.b16 %v189, %v188
    %v202 = vpack.c.b16 %v191, %v190
    %v203 = vpack.c.b16 %v193, %v192
    %v204 = vpack.c.b16 %v195, %v194
    %v205 = vpack.c.b16 %v197, %v196
    %214 = vmatprep.subr.bf16.mxu0 0
    %215 = vmatpush1.bf16.msra.mxu0 %v198
    %216 = vmatprep.subr.bf16.mxu0 0
    %217 = vmatpush1.bf16.msra.mxu0 %v199
    %218 = vmatprep.subr.bf16.mxu0 0
    %219 = vmatpush1.bf16.msra.mxu0 %v200
    %220 = vmatprep.subr.bf16.mxu0 0
    %221 = vmatpush1.bf16.msra.mxu0 %v201
    %222 = vmatprep.subr.bf16.mxu0 0
    %223 = vmatpush1.bf16.msra.mxu0 %v202
    %224 = vmatprep.subr.bf16.mxu0 0
    %225 = vmatpush1.bf16.msra.mxu0 %v203
    %226 = vmatprep.subr.bf16.mxu0 0
    %227 = vmatpush1.bf16.msra.mxu0 %v204
    %228 = vmatprep.subr.bf16.mxu0 0
    %229 = vmatpush1.bf16.msra.mxu0 %v205
    %230 = vmatprep.subr.bf16.mxu0 0
    %231 = vmatpush1.bf16.msra.mxu0 0
    %232 = vmatprep.subr.bf16.mxu0 0
    %233 = vmatpush1.bf16.msra.mxu0 0
    %234 = vmatprep.subr.bf16.mxu0 0
    %235 = vmatpush1.bf16.msra.mxu0 0
    %236 = vmatprep.subr.bf16.mxu0 0
    %237 = vmatpush1.bf16.msra.mxu0 0
    %238 = vmatprep.subr.bf16.mxu0 0
    %239 = vmatpush1.bf16.msra.mxu0 0
    %240 = vmatprep.subr.bf16.mxu0 0
    %241 = vmatpush1.bf16.msra.mxu0 0
    %242 = vmatprep.subr.bf16.mxu0 0
    %243 = vmatpush1.bf16.msra.mxu0 0
    %244 = vmatprep.subr.bf16.mxu0 0
    %245 = vmatpush1.bf16.msra.mxu0 0
    %246 = vmatprep.mubr.bf16.mxu0 0
    %247 = vmatmul.mubr.bf16.gmra.mrb[0].mxu0 %v145
    %v248 = vpop.f32.mrb[0].mxu0
    %v249 = vadd.f32 %v165, %v248
    %v250 = vpop.f32.mrb[0].mxu0
    %v251 = vpop.f32.mrb[0].mxu0
    %v252 = vpop.f32.mrb[0].mxu0
    %253 = vdwg.mxu0
    %v254 = vmax.f32 %v249, 0.0
    %v255 = vpack.c.bf16 %v254, %v254
    %v256 = vld [vmem:[#allocation8] sm:$0xf]
    %v257 = vld [vmem:[#allocation8 + $0x4] sm:$0xf]
    %v258 = vld [vmem:[#allocation8 + $0x8] sm:$0xf]
    %v259 = vld [vmem:[#allocation8 + $0xc] sm:$0xf]
    %v260 = vld [vmem:[#allocation8 + $0x10] sm:$0xf]
    %v261 = vld [vmem:[#allocation8 + $0x14] sm:$0xf]
    %v262 = vld [vmem:[#allocation8 + $0x18] sm:$0xf]
    %v263 = vld [vmem:[#allocation8 + $0x1c] sm:$0xf]
    %v264 = vld [vmem:[#allocation8 + $0x20] sm:$0xf]
    %v265 = vld [vmem:[#allocation8 + $0x24] sm:$0xf]
    %v266 = vld [vmem:[#allocation8 + $0x28] sm:$0xf]
    %v267 = vld [vmem:[#allocation8 + $0x2c] sm:$0xf]
    %v268 = vld [vmem:[#allocation8 + $0x30] sm:$0xf]
    %v269 = vld [vmem:[#allocation8 + $0x34] sm:$0xf]
    %v270 = vld [vmem:[#allocation8 + $0x38] sm:$0xf]
    %v271 = vld [vmem:[#allocation8 + $0x3c] sm:$0xf]
    %v272 = vld [vmem:[%s5] sm:$0x1]
    %v274 = vlaneseq
    %v275 = vshrl.u32 %v274, 7
    %v276 = vsub.s32 0, %v275
    %v277 = vrot.slane %v272, %v276
    %v295 = vunpack.c.l.b16 %v256
    %v296 = vunpack.c.l.b16 %v257
    %v297 = vunpack.c.l.b16 %v258
    %v298 = vunpack.c.l.b16 %v259
    %v299 = vunpack.c.l.b16 %v260
    %v300 = vunpack.c.l.b16 %v261
    %v301 = vunpack.c.l.b16 %v262
    %v302 = vunpack.c.l.b16 %v263
    %v303 = vunpack.c.l.b16 %v264
    %v304 = vunpack.c.l.b16 %v265
    %v305 = vunpack.c.l.b16 %v266
    %v306 = vunpack.c.l.b16 %v267
    %v307 = vunpack.c.l.b16 %v268
    %v308 = vunpack.c.l.b16 %v269
    %v309 = vunpack.c.l.b16 %v270
    %v310 = vunpack.c.l.b16 %v271
    %v311 = vpack.c.b16 %v296, %v295
    %v312 = vpack.c.b16 %v298, %v297
    %v313 = vpack.c.b16 %v300, %v299
    %v314 = vpack.c.b16 %v302, %v301
    %v315 = vpack.c.b16 %v304, %v303
    %v316 = vpack.c.b16 %v306, %v305
    %v317 = vpack.c.b16 %v308, %v307
    %v318 = vpack.c.b16 %v310, %v309
    %327 = vmatprep.subr.bf16.mxu0 0
    %328 = vmatpush1.bf16.msra.mxu0 %v311
    %329 = vmatprep.subr.bf16.mxu0 0
    %330 = vmatpush1.bf16.msra.mxu0 %v312
    %331 = vmatprep.subr.bf16.mxu0 0
    %332 = vmatpush1.bf16.msra.mxu0 %v313
    %333 = vmatprep.subr.bf16.mxu0 0
    %334 = vmatpush1.bf16.msra.mxu0 %v314
    %335 = vmatprep.subr.bf16.mxu0 0
    %336 = vmatpush1.bf16.msra.mxu0 %v315
    %337 = vmatprep.subr.bf16.mxu0 0
    %338 = vmatpush1.bf16.msra.mxu0 %v316
    %339 = vmatprep.subr.bf16.mxu0 0
    %340 = vmatpush1.bf16.msra.mxu0 %v317
    %341 = vmatprep.subr.bf16.mxu0 0
    %342 = vmatpush1.bf16.msra.mxu0 %v318
    %343 = vmatprep.subr.bf16.mxu0 0
    %344 = vmatpush1.bf16.msra.mxu0 0
    %345 = vmatprep.subr.bf16.mxu0 0
    %346 = vmatpush1.bf16.msra.mxu0 0
    %347 = vmatprep.subr.bf16.mxu0 0
    %348 = vmatpush1.bf16.msra.mxu0 0
    %349 = vmatprep.subr.bf16.mxu0 0
    %350 = vmatpush1.bf16.msra.mxu0 0
    %351 = vmatprep.subr.bf16.mxu0 0
    %352 = vmatpush1.bf16.msra.mxu0 0
    %353 = vmatprep.subr.bf16.mxu0 0
    %354 = vmatpush1.bf16.msra.mxu0 0
    %355 = vmatprep.subr.bf16.mxu0 0
    %356 = vmatpush1.bf16.msra.mxu0 0
    %357 = vmatprep.subr.bf16.mxu0 0
    %358 = vmatpush1.bf16.msra.mxu0 0
    %359 = vmatprep.mubr.bf16.mxu0 0
    %360 = vmatmul.mubr.bf16.gmra.mrb[0].mxu0 %v255
    %v361 = vpop.f32.mrb[0].mxu0
    %v362 = vadd.f32 %v277, %v361
    %v363 = vpop.f32.mrb[0].mxu0
    %v364 = vpop.f32.mrb[0].mxu0
    %v365 = vpop.f32.mrb[0].mxu0
    %366 = vdwg.mxu0
    %368 = vrot.lane.b32.xlu0 %v362, 127
    %v369 = vpop.permute.xlu0 %368
    %v371 = vsub.f32 %v362, %v369
    %373 = vset.pattern.permute.xlu0 8
    %374 = vperm.xlu0 %373, %v371
    %v375 = vpop.permute.xlu0 %374
    %v377 = vadd.f32 %v362, %v375
    %vm378 = vcmask 64512
    %379 = vst.msk [vmem:[#allocation10] sm:$0xff] %vm378, %v377
    // Predicated region
    $region42: #{tpu_custom_call.1} parent=1 // pred_check
      _
    $region43: #{tpu_custom_call.1} parent=1 // pred_check_branch
      %381 = sbr.rel (0) target = $region45
    $region44: #{tpu_custom_call.1} parent=1 // pred_region
      %s383 = ssub.s32 128, 128
      %384 = vsyncadd [#allocation4], %s383
      %s386 = sshll.u32 [#allocation10], 4
      %s387 = int_to_ptr.vmem [resolvable:$true] %s386
      %389 = dma.vmem_to_hbm [thread:$0]  %s387, 128, %s6, [#allocation4]
    $region45: #{tpu_custom_call.1} parent=1 // pred_fallthru
      _
    // Predicated region
    $region46: #{tpu_custom_call.1} parent=1 // pred_check
      _
    $region47: #{tpu_custom_call.1} parent=1 // pred_check_branch
      %391 = sbr.rel (0) target = $region49
    $region48: #{tpu_custom_call.1} parent=1 // pred_region
      %392 = dma.done [#allocation4], 128
    $region49: #{tpu_custom_call.1} parent=1 // pred_fallthru
      _
    %393 = vsyncpa [#allocation3], 1
    %394 = vsyncpa [#allocation6], 1
    %395 = vsyncpa [#allocation9], 1
    %396 = vsyncpa [#allocation4], 1

</llo_original>
